<compile_context>
chip_gen: v6e
topology: v6e:2x2x1
jax: 0.10.0
libtpu: 0.0.40
codegen_flags: <defaults>
</compile_context>

<pallas_src>
import functools

import jax
import jax.numpy as jnp
from jax.experimental import pallas as pl
from jax.experimental.pallas import tpu as pltpu


# ---------------------------------------------------------------------------
# Kernels
# ---------------------------------------------------------------------------

def _conv_kernel_single_k(w_ref, b_ref, p_ref, o_ref):
    """Whole reduction in one block: out = W @ P + b (no scratch accumulator).

    w_ref: (C_out, K)  f32, resident     b_ref: (C_out, 1) f32, resident
    p_ref: (1, K, tm)  f32               o_ref: (1, C_out, tm) f32
    """
    y = jnp.dot(w_ref[...], p_ref[0], preferred_element_type=jnp.float32)
    o_ref[0] = (y + b_ref[...]).astype(o_ref.dtype)


def _conv_kernel_chunked_k(w_ref, b_ref, p_ref, o_ref, acc_ref, *, tk):
    """Reduction chunked over grid axis 2 with an f32 VMEM accumulator.

    Weights stay fully resident (constant block index) and are sliced
    in-kernel, so there is no per-step weight DMA.
    """
    kk = pl.program_id(2)

    @pl.when(kk == 0)
    def _():
        acc_ref[...] = jnp.zeros_like(acc_ref)

    w = w_ref[:, pl.ds(pl.multiple_of(kk * tk, tk), tk)]
    acc_ref[...] += jnp.dot(w, p_ref[0], preferred_element_type=jnp.float32)

    @pl.when(kk == pl.num_programs(2) - 1)
    def _():
        o_ref[0] = (acc_ref[...] + b_ref[...]).astype(o_ref.dtype)


# ---------------------------------------------------------------------------
# Patch extraction (wrapper side)
# ---------------------------------------------------------------------------

def _extract_patches(x, k, stride, padding):
    """Return P of shape (N, C_in*k*k, Ho*Wo) plus (Ho, Wo).

    For the module default k=1/stride=1/padding=0 this is a *free* reshape of
    the NCHW input (no HBM copy, no transpose).
    """
    N, C, H, W = x.shape
    if k == 1 and stride == 1 and padding == 0:
        return x.reshape(N, C, H * W), H, W

    if padding > 0:
        x = jnp.pad(x, ((0, 0), (0, 0), (padding, padding), (padding, padding)))
    Hp, Wp = H + 2 * padding, W + 2 * padding
    Ho = (Hp - k) // stride + 1
    Wo = (Wp - k) // stride + 1

    if k == 1:
        xs = x[:, :, :stride * Ho:stride, :stride * Wo:stride]
        return xs.reshape(N, C, Ho * Wo), Ho, Wo

    # TODO(synk): k>1 still materializes the k^2 im2col in HBM; a per-tap
    # reduction-grid variant (shifted slices via index_map) would avoid it.
    cols = []
    for i in range(k):
        for j in range(k):
            cols.append(x[:, :, i:i + stride * Ho:stride, j:j + stride * Wo:stride])
    p = jnp.stack(cols, axis=2)                     # (N, C, k*k, Ho, Wo)
    return p.reshape(N, C * k * k, Ho * Wo), Ho, Wo


# ---------------------------------------------------------------------------
# Forward
# ---------------------------------------------------------------------------

@functools.partial(
    jax.jit, static_argnames=("kernel_size", "stride", "padding", "groups"))
def conv_only_forward(x, weight, bias, *, kernel_size=1, stride=1, padding=0,
                      groups=1):
    """Equivalent of ConvOnly.forward: nn.Conv2d(..., bias=True)(x).

    x:      (N, C_in, H, W)      float32, NCHW
    weight: (C_out, C_in, k, k)  float32 (PyTorch OIHW layout)
    bias:   (C_out,)             float32
    """
    assert groups == 1  # TODO(synk): grouped/depthwise conv not implemented (module default groups=1)
    N, C_in, H, W = x.shape
    C_out = weight.shape[0]
    k = kernel_size

    patches, Ho, Wo = _extract_patches(x, k, stride, padding)   # (N, K, M)
    K = C_in * k * k
    M = Ho * Wo

    w2 = weight.reshape(C_out, K).astype(jnp.float32)
    b2 = bias.reshape(C_out, 1).astype(jnp.float32)

    # ---- M tiling (output lane axis): whole row if it fits, else 1024-wide
    # (multiple of 128) tiles; partial last tile -> masked OOB stores, no pad copy.
    tm = M if M <= 1024 else 1024
    num_m = -(-M // tm)

    # ---- K (reduction) tiling: single block for the common case; chunk with
    # explicit zero padding (reduction axis must be real zeros) only if K large.
    if K <= 2048:
        tk, Kp, num_k = K, K, 1
    else:
        tk = 512
        Kp = -(-K // tk) * tk
        num_k = Kp // tk
        if Kp != K:
            patches = jnp.pad(patches, ((0, 0), (0, Kp - K), (0, 0)))
            w2 = jnp.pad(w2, ((0, 0), (0, Kp - K)))

    cost = pl.CostEstimate(
        flops=2 * N * M * K * C_out,
        transcendentals=0,
        bytes_accessed=(N * Kp * M + C_out * Kp + N * C_out * M + C_out) * 4,
    )

    # VMEM: double-buffered activation/output blocks + resident weights (+acc).
    # Only raise the scoped limit when needed; keep ~25% physical headroom.
    acc_bytes = C_out * tm * 4 if num_k > 1 else 0
    vmem_need = (2 * tk * tm * 4 + 2 * C_out * tm * 4 + 2 * C_out * Kp * 4
                 + acc_bytes + 4096)
    cp_kwargs = {}
    if vmem_need > 30 * 1024 * 1024:
        try:
            vmem_cap = int(pltpu.get_tpu_info().vmem_capacity_bytes)
        except Exception:  # conservative fallback (v7x-sized)
            vmem_cap = 64 * 1024 * 1024
        cp_kwargs["vmem_limit_bytes"] = min(vmem_need + (8 << 20),
                                            (vmem_cap * 3) // 4)

    if num_k == 1:
        kernel = _conv_kernel_single_k
        grid = (N, num_m)
        in_specs = [
            pl.BlockSpec((C_out, Kp), lambda n, i: (0, 0)),      # resident weights
            pl.BlockSpec((C_out, 1), lambda n, i: (0, 0)),       # resident bias
            pl.BlockSpec((1, Kp, tm), lambda n, i: (n, 0, i)),   # activations
        ]
        out_specs = pl.BlockSpec((1, C_out, tm), lambda n, i: (n, 0, i))
        scratch = []
        dims = ("parallel", "parallel")
    else:
        kernel = functools.partial(_conv_kernel_chunked_k, tk=tk)
        grid = (N, num_m, num_k)
        in_specs = [
            pl.BlockSpec((C_out, Kp), lambda n, i, kk: (0, 0)),
            pl.BlockSpec((C_out, 1), lambda n, i, kk: (0, 0)),
            pl.BlockSpec((1, tk, tm), lambda n, i, kk: (n, kk, i)),
        ]
        out_specs = pl.BlockSpec((1, C_out, tm), lambda n, i, kk: (n, 0, i))
        scratch = [pltpu.VMEM((C_out, tm), jnp.float32)]
        dims = ("parallel", "parallel", "arbitrary")

    out = pl.pallas_call(
        kernel,
        out_shape=jax.ShapeDtypeStruct((N, C_out, M), x.dtype),
        grid_spec=pltpu.PrefetchScalarGridSpec(
            num_scalar_prefetch=0,
            grid=grid,
            in_specs=in_specs,
            out_specs=out_specs,
            scratch_shapes=scratch,
        ),
        compiler_params=pltpu.CompilerParams(dimension_semantics=dims,
                                             **cp_kwargs),
        cost_estimate=cost,
    )(w2, b2, patches)

    # Output is already (N, C_out, Ho*Wo): a free reshape, no transpose pass.
    return out.reshape(N, C_out, Ho, Wo)


# ---------------------------------------------------------------------------
# Test
# ---------------------------------------------------------------------------

if __name__ == "__main__":
    key = jax.random.PRNGKey(0)
    kx, kw, kb = jax.random.split(key, 3)

    # ConvOnly(in_channels=4, out_channels=8) with module defaults k=1,s=1,p=0,g=1
    in_channels, out_channels, k = 4, 8, 1
    x = jax.random.normal(kx, (2, in_channels, 16, 16), dtype=jnp.float32)
    weight = jax.random.normal(
        kw, (out_channels, in_channels, k, k), dtype=jnp.float32) * 0.1
    bias = jax.random.normal(kb, (out_channels,), dtype=jnp.float32) * 0.1

    y = conv_only_forward(x, weight, bias, kernel_size=k, stride=1, padding=0,
                          groups=1)
    jax.block_until_ready(y)

    ref = jax.lax.conv_general_dilated(
        x, weight, window_strides=(1, 1), padding="VALID",
        dimension_numbers=("NCHW", "OIHW", "NCHW")) + bias.reshape(1, -1, 1, 1)
    assert y.shape == (2, out_channels, 16, 16)
    assert jnp.allclose(y, ref, atol=2e-2, rtol=2e-2), \
        float(jnp.max(jnp.abs(y - ref)))

    # Secondary sanity check: general path, ConvOnly(4, 8, kernel_size=3, padding=1).
    k2 = 3
    w3 = jax.random.normal(kw, (out_channels, in_channels, k2, k2),
                           dtype=jnp.float32) * 0.1
    y3 = conv_only_forward(x, w3, bias, kernel_size=k2, stride=1, padding=1,
                           groups=1)
    jax.block_until_ready(y3)
    ref3 = jax.lax.conv_general_dilated(
        x, w3, window_strides=(1, 1), padding=((1, 1), (1, 1)),
        dimension_numbers=("NCHW", "OIHW", "NCHW")) + bias.reshape(1, -1, 1, 1)
    assert y3.shape == (2, out_channels, 16, 16)
    assert jnp.allclose(y3, ref3, atol=2e-2, rtol=2e-2), \
        float(jnp.max(jnp.abs(y3 - ref3)))

    print("KERNEL_OK")
</pallas_src>

<mosaic_0001>
module attributes {stable_mosaic.version = 11 : i64} {
  func.func @_conv_kernel_single_k(%arg0: i32, %arg1: i32, %arg2: memref<8x4xf32, #tpu.memory_space<vmem>>, %arg3: memref<8x1xf32, #tpu.memory_space<vmem>>, %arg4: memref<1x4x256xf32, #tpu.memory_space<vmem>>, %arg5: memref<1x8x256xf32, #tpu.memory_space<vmem>>) attributes {dimension_semantics = [#tpu.dimension_semantics<parallel>, #tpu.dimension_semantics<parallel>], iteration_bounds = array<i64: 2, 1>, scalar_prefetch = 0 : i64, scratch_operands = 0 : i64, tpu.core_type = #tpu.core_type<tc>, window_params = [{pipeline_mode = #tpu.pipeline_mode<synchronous>, transform_indices = @transform_0, window_bounds = array<i64: 8, 4>}, {pipeline_mode = #tpu.pipeline_mode<synchronous>, transform_indices = @transform_1, window_bounds = array<i64: 8, 1>}, {transform_indices = @transform_2, window_bounds = array<i64: 1, 4, 256>}, {transform_indices = @transform_3, window_bounds = array<i64: 1, 8, 256>}]} {
    %c0 = arith.constant 0 : index
    %c0_0 = arith.constant 0 : index
    %0 = vector.load %arg2[%c0, %c0_0] : memref<8x4xf32, #tpu.memory_space<vmem>>, vector<8x4xf32>
    %c0_1 = arith.constant 0 : index
    %c0_2 = arith.constant 0 : index
    %c0_3 = arith.constant 0 : index
    %1 = vector.load %arg4[%c0_1, %c0_2, %c0_3] : memref<1x4x256xf32, #tpu.memory_space<vmem>>, vector<1x4x256xf32>
    %2 = vector.shape_cast %1 : vector<1x4x256xf32> to vector<4x256xf32>
    %cst = arith.constant dense<0.000000e+00> : vector<8x256xf32>
    %3 = tpu.matmul %0, %2, %cst {dimension_numbers = #tpu.dot_dimension_numbers<[1], [0], [0], [1], [0, 0, 1, 1], [], []>} : vector<8x4xf32>, vector<4x256xf32>, vector<8x256xf32> -> vector<8x256xf32>
    %c0_4 = arith.constant 0 : index
    %c0_5 = arith.constant 0 : index
    %4 = vector.load %arg3[%c0_4, %c0_5] : memref<8x1xf32, #tpu.memory_space<vmem>>, vector<8x1xf32>
    %5 = vector.broadcast %4 : vector<8x1xf32> to vector<8x256xf32>
    %6 = arith.addf %3, %5 : vector<8x256xf32>
    %c0_6 = arith.constant 0 : index
    %c0_7 = arith.constant 0 : index
    %c0_8 = arith.constant 0 : index
    %7 = vector.load %arg5[%c0_6, %c0_7, %c0_8] : memref<1x8x256xf32, #tpu.memory_space<vmem>>, vector<1x8x256xf32>
    %8 = vector.shape_cast %7 : vector<1x8x256xf32> to vector<8x256xf32>
    %9 = vector.shape_cast %6 : vector<8x256xf32> to vector<1x8x256xf32>
    tpu.vector_store %arg5[%c0_6, %c0_7, %c0_8], %9 {strides = array<i32>} : memref<1x8x256xf32, #tpu.memory_space<vmem>>, vector<1x8x256xf32>,
    return
  }
  func.func @transform_0(%arg0: i32, %arg1: i32) -> (i32, i32) {
    %c0_i32 = arith.constant 0 : i32
    %c0_i32_0 = arith.constant 0 : i32
    %c0_i32_1 = arith.constant 0 : i32
    return %c0_i32, %c0_i32_0 : i32, i32
  }
  func.func @transform_1(%arg0: i32, %arg1: i32) -> (i32, i32) {
    %c0_i32 = arith.constant 0 : i32
    %c0_i32_0 = arith.constant 0 : i32
    %c0_i32_1 = arith.constant 0 : i32
    return %c0_i32, %c0_i32_0 : i32, i32
  }
  func.func @transform_2(%arg0: i32, %arg1: i32) -> (i32, i32, i32) {
    %c0_i32 = arith.constant 0 : i32
    %c0_i32_0 = arith.constant 0 : i32
    return %arg0, %c0_i32, %arg1 : i32, i32, i32
  }
  func.func @transform_3(%arg0: i32, %arg1: i32) -> (i32, i32, i32) {
    %c0_i32 = arith.constant 0 : i32
    %c0_i32_0 = arith.constant 0 : i32
    return %arg0, %c0_i32, %arg1 : i32, i32, i32
  }
}

</mosaic_0001>

<llo_original>
// kernel: conv_only_forward.1
$region0: #{conv_only_forward.1}
  #allocation0 [shape = 'u32[]', space=smem, size = 0x4, offset = 0x4, fixed_abs, tag = 'smem constant byte address 0x4 - core index']
  #allocation1 [shape = 'u32[144,128]{1,0:T(1,128)}', space=vmem, size = 0x12000, scoped, tag = 'internal scratch']
  %s0 = inlined_call_operand.vmem [shape: f32[8,4], index: 0, kind: input, shape index: {}]
  %s1 = inlined_call_operand.vmem [shape: f32[8,1], index: 1, kind: input, shape index: {}]
  %s2 = inlined_call_operand.vmem [shape: f32[2,4,256], index: 2, kind: input, shape index: {}]
  %s3 = inlined_call_operand.vmem [shape: f32[2,8,256], index: 3, kind: output, shape index: {}]
  %s4 = sld [smem:[#allocation0]]
  $region45: #{conv_only_forward.1} parent=0
    _
  %s6 = ssub.s32 1, %s4
  %s7 = scalar_select 0, %s6, %s4
  loop: start=0, step=1, limit=4
  $region2: #{conv_only_forward.1} parent=0 // loop_pre_header
    _
  $region3: #{conv_only_forward.1} parent=0 // loop_header
    %s9 = sphi 0, %s13
    %p10 = scmp.ge.s32.totalorder %s9, 4
    %s16 = sphi 0, %s28
    %s17 = sphi 0, %s24
    %s18 = sphi 0, %s16
    %s19 = sphi 0, %s17
    %s20 = sphi 0, %s18
    %s21 = sphi 0, %s19
    %s29 = sphi 0, %s29
    %s31 = sphi 0, %s29
    %s32 = sphi 0, %s31
    %s46 = sphi 0, %s32
    %s50 = sphi 0, %s50
    %s52 = sphi 0, %s50
    %s53 = sphi 0, %s52
    %s67 = sphi 0, %s53
    %s75 = sphi 0, %s77
    %s78 = sphi 0, %s75
    %s79 = sphi 0, %s78
    %s95 = sphi 0, %s79
    %s103 = sphi 0, %s105
    %s106 = sphi 0, %s103
    %s107 = sphi 0, %s106
    %s123 = sphi 0, %s107
  $region4: #{conv_only_forward.1} parent=0 // loop_header_branch
    %12 = sbr.rel (%p10) target = $region8
  $region5: #{conv_only_forward.1} parent=0 // loop_body
    %s14 = ssub.s32 %s9, 1
    %s15 = ssub.s32 %s9, 2
    %s22 = sadd.s32 1, %s17
    %p23 = scmp.ge.s32.totalorder %s22, 1
    %s24 = scalar_select %p23, 0, %s22
    %s25 = sadd.s32 1, %s16
    %s26 = scalar_select %p23, %s25, %s16
    %p27 = scmp.ge.s32.totalorder %s26, 2
    %s28 = scalar_select %p27, 0, %s26
    %s30 = sadd.s32 %s29, 1
    %p33 = scmp.eq.s32.totalorder %s9, 1
    %p34 = scmp.ne.s32.totalorder %s29, %s31
    %p35 = scmp.eq.s32.totalorder %s9, 0
    %p36 = por %p34, %p35
    %p37 = scmp.ne.s32.totalorder %s29, %s31
    %p38 = scmp.eq.s32.totalorder %s14, 1
    %p39 = por %p37, %p38
    %p40 = scmp.ne.s32.totalorder %s31, %s32
    %p41 = scmp.eq.s32.totalorder %s14, 0
    %p42 = por %p40, %p41
    %p43 = scmp.ne.s32.totalorder %s31, %s32
    %p44 = scmp.eq.s32.totalorder %s15, 1
    %p45 = por %p43, %p44
    %p47 = scmp.ne.s32.totalorder %s32, %s46
    %p48 = scmp.eq.s32.totalorder %s15, 0
    %p49 = por %p47, %p48
    %s51 = sadd.s32 %s50, 1
    %p54 = scmp.eq.s32.totalorder %s9, 1
    %p55 = scmp.ne.s32.totalorder %s50, %s52
    %p56 = scmp.eq.s32.totalorder %s9, 0
    %p57 = por %p55, %p56
    %p58 = scmp.ne.s32.totalorder %s50, %s52
    %p59 = scmp.eq.s32.totalorder %s14, 1
    %p60 = por %p58, %p59
    %p61 = scmp.ne.s32.totalorder %s52, %s53
    %p62 = scmp.eq.s32.totalorder %s14, 0
    %p63 = por %p61, %p62
    %p64 = scmp.ne.s32.totalorder %s52, %s53
    %p65 = scmp.eq.s32.totalorder %s15, 1
    %p66 = por %p64, %p65
    %p68 = scmp.ne.s32.totalorder %s53, %s67
    %p69 = scmp.eq.s32.totalorder %s15, 0
    %p70 = por %p68, %p69
    %s71 = ssub.s32 %s16, %s28
    %s72 = ssub.s32 %s17, %s24
    %s73 = sor.u32 %s71, %s72
    %p74 = scmp.eq.s32.totalorder %s73, 0
    %s76 = sadd.s32 %s75, 1
    %s77 = scalar_select %p74, %s75, %s76
    %p80 = pneg %p74
    %p81 = scmp.eq.s32.totalorder %s9, 1
    %p82 = por %p80, %p81
    %p83 = scmp.ne.s32.totalorder %s75, %s78
    %p84 = scmp.eq.s32.totalorder %s9, 0
    %p85 = por %p83, %p84
    %p86 = scmp.ne.s32.totalorder %s75, %s78
    %p87 = scmp.eq.s32.totalorder %s14, 1
    %p88 = por %p86, %p87
    %p89 = scmp.ne.s32.totalorder %s78, %s79
    %p90 = scmp.eq.s32.totalorder %s14, 0
    %p91 = por %p89, %p90
    %p92 = scmp.ne.s32.totalorder %s78, %s79
    %p93 = scmp.eq.s32.totalorder %s15, 1
    %p94 = por %p92, %p93
    %p96 = scmp.ne.s32.totalorder %s79, %s95
    %p97 = scmp.eq.s32.totalorder %s15, 0
    %p98 = por %p96, %p97
    %s99 = ssub.s32 %s16, %s28
    %s100 = ssub.s32 %s17, %s24
    %s101 = sor.u32 %s99, %s100
    %p102 = scmp.eq.s32.totalorder %s101, 0
    %s104 = sadd.s32 %s103, 1
    %s105 = scalar_select %p102, %s103, %s104
    %p108 = pneg %p102
    %p109 = scmp.eq.s32.totalorder %s9, 1
    %p110 = por %p108, %p109
    %p111 = scmp.ne.s32.totalorder %s103, %s106
    %p112 = scmp.eq.s32.totalorder %s9, 0
    %p113 = por %p111, %p112
    %p114 = scmp.ne.s32.totalorder %s103, %s106
    %p115 = scmp.eq.s32.totalorder %s14, 1
    %p116 = por %p114, %p115
    %p117 = scmp.ne.s32.totalorder %s106, %s107
    %p118 = scmp.eq.s32.totalorder %s14, 0
    %p119 = por %p117, %p118
    %p120 = scmp.ne.s32.totalorder %s106, %s107
    %p121 = scmp.eq.s32.totalorder %s15, 1
    %p122 = por %p120, %p121
    %p124 = scmp.ne.s32.totalorder %s107, %s123
    %p125 = scmp.eq.s32.totalorder %s15, 0
    %p126 = por %p124, %p125
    %p127 = scmp.le.s32.totalorder 1, %s9
    %p128 = scmp.lt.s32.totalorder %s9, 3
    %p129 = pnand %p127, %p128
    %p130 = pneg %p129
    // Predicated region
    $region9: #{conv_only_forward.1} parent=5 // pred_check
      _
    $region10: #{conv_only_forward.1} parent=5 // pred_check_branch
      %132 = sbr.rel (%p129) target = $region12
    $region11: #{conv_only_forward.1} parent=5 // pred_region
      %s133 = ssub.s32 %s9, 1
      // Predicated region
      $region13: #{conv_only_forward.1} parent=11 // pred_check
        %p134 = pneg %p42
      $region14: #{conv_only_forward.1} parent=11 // pred_check_branch
        %136 = sbr.rel (%p134) target = $region16
      $region15: #{conv_only_forward.1} parent=11 // pred_region
        _
      $region16: #{conv_only_forward.1} parent=11 // pred_fallthru
        _
      // Predicated region
      $region17: #{conv_only_forward.1} parent=11 // pred_check
        %p137 = pneg %p63
      $region18: #{conv_only_forward.1} parent=11 // pred_check_branch
        %139 = sbr.rel (%p137) target = $region20
      $region19: #{conv_only_forward.1} parent=11 // pred_region
        _
      $region20: #{conv_only_forward.1} parent=11 // pred_fallthru
        _
    $region12: #{conv_only_forward.1} parent=5 // pred_fallthru
      _
    %p140 = scmp.lt.s32.totalorder %s9, 2
    // Predicated region
    $region21: #{conv_only_forward.1} parent=5 // pred_check
      %p141 = pneg %p140
    $region22: #{conv_only_forward.1} parent=5 // pred_check_branch
      %143 = sbr.rel (%p141) target = $region24
    $region23: #{conv_only_forward.1} parent=5 // pred_region
      // Predicated region
      $region25: #{conv_only_forward.1} parent=23 // pred_check
        %p144 = pneg %p85
      $region26: #{conv_only_forward.1} parent=23 // pred_check_branch
        %146 = sbr.rel (%p144) target = $region28
      $region27: #{conv_only_forward.1} parent=23 // pred_region
        %s147 = smul.u32 2, %s17
        %p148 = scmp.lt.s32.totalorder %s16, 1
        %s149 = scalar_select %p148, %s16, 1
        %p150 = scmp.lt.s32.totalorder %s147, 1
        %s151 = scalar_select %p150, %s147, 1
        %s152 = smul.addr %s149, 2
        %s153 = sadd.s32 %s151, %s152
        %s154 = smul.addr %s153, 4
        %s155 = scalar_lea.vmem %s2, %s154
        %s156 = smul.u32 2, %s17
      $region28: #{conv_only_forward.1} parent=23 // pred_fallthru
        _
    $region24: #{conv_only_forward.1} parent=5 // pred_fallthru
      _
    %p157 = scmp.le.s32.totalorder 1, %s9
    %p158 = scmp.lt.s32.totalorder %s9, 3
    %p159 = pnand %p157, %p158
    %p160 = pneg %p159
    // Predicated region
    $region29: #{conv_only_forward.1} parent=5 // pred_check
      _
    $region30: #{conv_only_forward.1} parent=5 // pred_check_branch
      %162 = sbr.rel (%p159) target = $region32
    $region31: #{conv_only_forward.1} parent=5 // pred_region
      %s163 = ssub.s32 %s9, 1
      %p164 = pneg %p42
      %p165 = pneg %p39
      %p166 = pneg %p63
      %p167 = pneg %p60
      %s168 = smul.u32 2, %s19
      %p169 = scmp.lt.s32.totalorder %s18, 1
      %s170 = scalar_select %p169, %s18, 1
      %p171 = scmp.lt.s32.totalorder %s168, 1
      %s172 = scalar_select %p171, %s168, 1
      %s173 = smul.addr %s170, 2
      %s174 = sadd.s32 %s172, %s173
      %s175 = smul.addr %s174, 4
      %s176 = scalar_lea.vmem %s2, %s175
      %p177 = pneg %p91
      %p178 = pneg %p88
      %p179 = pneg %p119
      %p180 = pneg %p116
      %s181 = smul.u32 2, %s19
      %p182 = scmp.lt.s32.totalorder %s18, 1
      %s183 = scalar_select %p182, %s18, 1
      %p184 = scmp.lt.s32.totalorder %s181, 1
      %s185 = scalar_select %p184, %s181, 1
      %s186 = smul.addr %s183, 2
      %s187 = sadd.s32 %s185, %s186
      %s188 = smul.addr %s187, 8
      %s189 = scalar_lea.vmem %s3, %s188
      %s190 = smul.u32 2, %s19
      %p191 = scmp.lt.s32.totalorder %s18, 1
      %s192 = scalar_select %p191, %s18, 1
      %p193 = scmp.lt.s32.totalorder %s190, 1
      %s194 = scalar_select %p193, %s190, 1
      %s195 = smul.addr %s192, 2
      %s196 = sadd.s32 %s194, %s195
      %s197 = smul.addr %s196, 4
      %s198 = scalar_lea.vmem %s2, %s197
      %s199 = smul.u32 2, %s19
      %s200 = smul.u32 2, %s19
      %p201 = scmp.lt.s32.totalorder %s18, 1
      %s202 = scalar_select %p201, %s18, 1
      %p203 = scmp.lt.s32.totalorder %s200, 1
      %s204 = scalar_select %p203, %s200, 1
      %s205 = smul.addr %s202, 2
      %s206 = sadd.s32 %s204, %s205
      %s207 = smul.addr %s206, 8
      %s208 = scalar_lea.vmem %s3, %s207
      %s209 = smul.u32 2, %s19
      %v210 = vld [vmem:[%s0] sm:$0xff]
      %v211 = vld [vmem:[%s198] sm:$0xff]
      %v212 = vld [vmem:[%s1] sm:$0xff]
      %214 = vset.pattern.permute.xlu0 0
      %215 = vperm.xlu0 %214, %v212
      %v216 = vpop.permute.xlu0 %215
      %v219 = vcombine.high %v211, %v211
      %vm220 = vcmask 31744
      %v222 = vsel %vm220, %v210, 0
      %vm224 = vcmask 1043456
      %v225 = vsel %vm224, %v211, 0
      %v227 = vsel %vm224, %v219, 0
      %229 = vmatprep.subr.mxu0 0.0
      %230 = vmatpush1.msra.mxu0 0.0
      %231 = vmatprep.subr.mxu0 0.0
      %232 = vmatpush1.msra.mxu0 0.0
      %233 = vmatprep.subr.mxu0 0.0
      %234 = vmatpush1.msra.mxu0 0.0
      %235 = vmatprep.subr.mxu0 0.0
      %236 = vmatpush1.msra.mxu0 0.0
      %237 = vmatprep.subr.mxu0 0.0
      %238 = vmatpush1.msra.mxu0 0.0
      %239 = vmatprep.subr.mxu0 0.0
      %240 = vmatpush1.msra.mxu0 0.0
      %241 = vmatprep.subr.mxu0 0.0
      %242 = vmatpush1.msra.mxu0 0.0
      %243 = vmatprep.subr.mxu0 0.0
      %244 = vmatpush1.msra.mxu0 0.0
      %245 = vmatprep.subr.mxu0 0.0
      %246 = vmatpush1.msra.mxu0 0.0
      %247 = vmatprep.subr.mxu0 0.0
      %248 = vmatpush1.msra.mxu0 0.0
      %249 = vmatprep.subr.mxu0 0.0
      %250 = vmatpush1.msra.mxu0 0.0
      %251 = vmatprep.subr.mxu0 0.0
      %252 = vmatpush1.msra.mxu0 0.0
      %253 = vmatprep.subr.mxu0 0.0
      %254 = vmatpush1.msra.mxu0 0.0
      %255 = vmatprep.subr.mxu0 0.0
      %256 = vmatpush1.msra.mxu0 0.0
      %257 = vmatprep.subr.mxu0 0.0
      %258 = vmatpush1.msra.mxu0 0.0
      %259 = vmatprep.subr.mxu0 %v227
      %260 = vmatpush1.msra.mxu0 %v225
      %261 = vmatprep.subr.mxu0 0.0
      %262 = vmatpush2.msra.mxu0 0.0
      %263 = vmatprep.subr.mxu0 0.0
      %264 = vmatpush2.msra.mxu0 0.0
      %265 = vmatprep.subr.mxu0 0.0
      %266 = vmatpush2.msra.mxu0 0.0
      %267 = vmatprep.subr.mxu0 0.0
      %268 = vmatpush2.msra.mxu0 0.0
      %269 = vmatprep.subr.mxu0 0.0
      %270 = vmatpush2.msra.mxu0 0.0
      %271 = vmatprep.subr.mxu0 0.0
      %272 = vmatpush2.msra.mxu0 0.0
      %273 = vmatprep.subr.mxu0 0.0
      %274 = vmatpush2.msra.mxu0 0.0
      %275 = vmatprep.subr.mxu0 0.0
      %276 = vmatpush2.msra.mxu0 0.0
      %277 = vmatprep.subr.mxu0 0.0
      %278 = vmatpush2.msra.mxu0 0.0
      %279 = vmatprep.subr.mxu0 0.0
      %280 = vmatpush2.msra.mxu0 0.0
      %281 = vmatprep.subr.mxu0 0.0
      %282 = vmatpush2.msra.mxu0 0.0
      %283 = vmatprep.subr.mxu0 0.0
      %284 = vmatpush2.msra.mxu0 0.0
      %285 = vmatprep.subr.mxu0 0.0
      %286 = vmatpush2.msra.mxu0 0.0
      %287 = vmatprep.subr.mxu0 0.0
      %288 = vmatpush2.msra.mxu0 0.0
      %289 = vmatprep.subr.mxu0 0.0
      %290 = vmatpush2.msra.mxu0 0.0
      %291 = vmatprep.subr.mxu0 0.0
      %292 = vmatpush2.msra.mxu0 0.0
      %293 = vmatprep.mubr.f32.mxu0 0.0
      %294 = vmatmul.mubr.f32.gmra.mxu0 %v222
      %v295 = vpop.f32.mrf.mxu0
      %v296 = vadd.f32 %v216, %v295
      %v297 = vpop.f32.mrf.mxu0
      %v298 = vadd.f32 %v216, %v297
      %299 = vdwg.mxu0
      %300 = vst [vmem:[%s208] sm:$0xff] %v296
      %301 = vst [vmem:[%s208 + $0x8] sm:$0xff] %v298
      %s302 = smul.u32 2, %s19
      %p303 = scmp.lt.s32.totalorder %s18, 1
      %s304 = scalar_select %p303, %s18, 1
      %p305 = scmp.lt.s32.totalorder %s302, 1
      %s306 = scalar_select %p305, %s302, 1
      %s307 = smul.addr %s304, 2
      %s308 = sadd.s32 %s306, %s307
      %s309 = smul.addr %s308, 8
      %s310 = scalar_lea.vmem %s3, %s309
      // Predicated region
      $region33: #{conv_only_forward.1} parent=31 // pred_check
        %p311 = pneg %p116
      $region34: #{conv_only_forward.1} parent=31 // pred_check_branch
        %313 = sbr.rel (%p311) target = $region36
      $region35: #{conv_only_forward.1} parent=31 // pred_region
        %s314 = smul.u32 2, %s19
      $region36: #{conv_only_forward.1} parent=31 // pred_fallthru
        _
    $region32: #{conv_only_forward.1} parent=5 // pred_fallthru
      _
    %p315 = scmp.le.s32.totalorder 2, %s9
    // Predicated region
    $region37: #{conv_only_forward.1} parent=5 // pred_check
      %p316 = pneg %p315
    $region38: #{conv_only_forward.1} parent=5 // pred_check_branch
      %318 = sbr.rel (%p316) target = $region40
    $region39: #{conv_only_forward.1} parent=5 // pred_region
      %s319 = ssub.s32 %s9, 2
      // Predicated region
      $region41: #{conv_only_forward.1} parent=39 // pred_check
        %p320 = pneg %p122
      $region42: #{conv_only_forward.1} parent=39 // pred_check_branch
        %322 = sbr.rel (%p320) target = $region44
      $region43: #{conv_only_forward.1} parent=39 // pred_region
        %s323 = smul.u32 2, %s21
        %p324 = scmp.lt.s32.totalorder %s20, 1
        %s325 = scalar_select %p324, %s20, 1
        %p326 = scmp.lt.s32.totalorder %s323, 1
        %s327 = scalar_select %p326, %s323, 1
        %s328 = smul.addr %s325, 2
        %s329 = sadd.s32 %s327, %s328
        %s330 = smul.addr %s329, 8
        %s331 = scalar_lea.vmem %s3, %s330
      $region44: #{conv_only_forward.1} parent=39 // pred_fallthru
        _
    $region40: #{conv_only_forward.1} parent=5 // pred_fallthru
      _
  $region6: #{conv_only_forward.1} parent=0 // loop_footer
    %s13 = sadd.s32 1, %s9
  $region7: #{conv_only_forward.1} parent=0 // loop_footer_branch
    %8 = sbr.rel target = $region3
  $region8: #{conv_only_forward.1} parent=0 // loop_exit
    _

</llo_original>
